<compile_context>
chip_gen: v6e
topology: v6e:2x2x1
jax: 0.10.0
libtpu: 0.0.40
codegen_flags: <defaults>
</compile_context>

<pallas_src>
import functools

import jax
import jax.numpy as jnp
from jax.experimental import pallas as pl
from jax.experimental.pallas import tpu as pltpu


_INV_SQRT2 = 0.7071067811865476
_LANE = 128


def _round_up(n, m):
    return ((n + m - 1) // m) * m


def _erf(x):
    # Abramowitz & Stegun 7.1.26 rational approximation, |error| < 1.5e-7.
    # Uses only mul/add + one exp (EUP), so it lowers cleanly in Mosaic.
    p = 0.3275911
    a1 = 0.254829592
    a2 = -0.284496736
    a3 = 1.421413741
    a4 = -1.453152027
    a5 = 1.061405429
    ax = jnp.abs(x)
    t = 1.0 / (1.0 + p * ax)
    poly = ((((a5 * t + a4) * t + a3) * t + a2) * t + a1) * t
    y = 1.0 - poly * jnp.exp(-(ax * ax))
    return jnp.where(x < 0.0, -y, y)


def _gelu_exact(x):
    # Matches PyTorch nn.GELU() default (erf form), not the tanh approximation.
    return 0.5 * x * (1.0 + _erf(x * _INV_SQRT2))


def _rotation_predictor_kernel(
    x_ref, w1_ref, b1_ref, gamma_ref, beta_ref, w2_ref, b2_ref, out_ref,
    *, eps, inv_d, mm_dtype
):
    # x_ref: (TB, Dp) input tile (streamed); weights are full, VMEM-resident.
    x = x_ref[...]
    w1 = w1_ref[...]
    if x.dtype != mm_dtype:
        x = x.astype(mm_dtype)
    if w1.dtype != mm_dtype:
        w1 = w1.astype(mm_dtype)

    # Linear 1 on the MXU, f32 accumulation.
    h = jnp.dot(x, w1, preferred_element_type=jnp.float32)       # (TB, Dp)
    h = h + b1_ref[...].astype(jnp.float32)                      # (1, Dp) broadcast

    # LayerNorm over the (true) feature dim — single-pass statistics.
    # Padded lanes of h are exactly zero (padded W1 cols / b1 are zero), so the
    # sums over the padded width equal the true-D sums; divide by true D.
    s1 = jnp.sum(h, axis=-1, keepdims=True)                      # (TB, 1)
    s2 = jnp.sum(h * h, axis=-1, keepdims=True)                  # (TB, 1)
    mean = s1 * inv_d
    var = s2 * inv_d - mean * mean
    hn = (h - mean) * jax.lax.rsqrt(var + eps)
    hn = hn * gamma_ref[...].astype(jnp.float32) + beta_ref[...].astype(jnp.float32)

    # GELU (exact erf form). Padded lanes: gamma=beta=0 -> hn=0 -> gelu(0)=0.
    act = _gelu_exact(hn)

    # Dropout(p=0.2) is identity in eval/inference forward.
    # TODO(synk): training-mode dropout needs pltpu.prng_seed / prng_random_bits
    #             masking plus 1/(1-p) scaling.

    # Linear 2 -> 4 rotation classes (output padded to 128 lanes; extra cols are 0).
    w2 = w2_ref[...]
    if w2.dtype != mm_dtype:
        w2 = w2.astype(mm_dtype)
    out = jnp.dot(act.astype(mm_dtype), w2, preferred_element_type=jnp.float32)
    out = out + b2_ref[...].astype(jnp.float32)                  # (1, 128) broadcast
    out_ref[...] = out.astype(out_ref.dtype)                     # full-lane store


def _choose_tb(B, d_pad, out_pad, max_block_b):
    """Pick a batch tile that fits a conservative VMEM budget and, when possible,
    yields >= 2 grid steps (v7x megacore sharding over the 'parallel' axis)."""
    if B <= 8:
        return B
    budget = 48 * 2**20  # conservative across v5e/v6e (128 MiB) and v7x (64 MiB/TC)
    itemsize = 4
    # Resident (pipeliner double-buffers them) weights/params:
    weight_bytes = 2 * itemsize * (d_pad * d_pad + 3 * d_pad + d_pad * out_pad + out_pad)
    # Per-row cost: double-buffered x tile + out tile + ~3 f32 (TB, Dp) intermediates.
    per_row = itemsize * (2 * (d_pad + out_pad) + 3 * d_pad)
    rows_fit = (budget - weight_bytes) // max(per_row, 1)
    tb_cap = max(8, int(rows_fit) // 8 * 8)
    tb = min(max_block_b, tb_cap, _round_up(B, 8))
    if tb >= B and B >= 16:
        # Split into (at least) two tiles so both v7x TensorCores get work.
        tb = max(8, _round_up((B + 1) // 2, 8))
    return tb


def rotation_predictor_forward(x, w1, b1, gamma, beta, w2, b2, *, eps=1e-5,
                               max_block_b=512):
    """x: [B, D]; w1: [D, D]; b1/gamma/beta: [D]; w2: [D, C]; b2: [C] -> [B, C]."""
    B, D = x.shape
    C = w2.shape[1]
    d_pad = _round_up(D, _LANE)
    out_pad = _round_up(max(C, _LANE), _LANE)

    # Zero-pad the feature dim to a lane multiple (exact: see kernel comments).
    if d_pad != D:
        pd = d_pad - D
        x = jnp.pad(x, ((0, 0), (0, pd)))
        w1 = jnp.pad(w1, ((0, pd), (0, pd)))
        b1 = jnp.pad(b1, ((0, pd),))
        gamma = jnp.pad(gamma, ((0, pd),))
        beta = jnp.pad(beta, ((0, pd),))
        w2 = jnp.pad(w2, ((0, pd), (0, 0)))
    # Pad the output dim to 128 lanes (unmasked stores; padded cols are zero).
    if out_pad != C:
        w2 = jnp.pad(w2, ((0, 0), (0, out_pad - C)))
        b2 = jnp.pad(b2, ((0, out_pad - C),))

    # Present 1-D params as lane-major (1, N) rows.
    b1_2d = b1.reshape(1, d_pad)
    gamma_2d = gamma.reshape(1, d_pad)
    beta_2d = beta.reshape(1, d_pad)
    b2_2d = b2.reshape(1, out_pad)

    # Feed the MXU narrow operands when inputs/weights are already bf16;
    # otherwise keep f32 operands (accumulation is f32 either way).
    if x.dtype == jnp.bfloat16 or w1.dtype == jnp.bfloat16:
        mm_dtype = jnp.bfloat16
    else:
        mm_dtype = jnp.float32

    TB = _choose_tb(B, d_pad, out_pad, max_block_b)

    # Explicit VMEM limit only when the working set approaches the scoped default.
    needed = 4 * (2 * TB * d_pad + 2 * d_pad * d_pad + 6 * d_pad
                  + 2 * d_pad * out_pad + 2 * out_pad + 2 * TB * out_pad
                  + 3 * TB * d_pad)
    vmem_limit = None
    if needed > 24 * 2**20:
        vmem_limit = int(min(64 * 2**20, needed + 8 * 2**20))

    kernel = functools.partial(
        _rotation_predictor_kernel, eps=eps, inv_d=1.0 / D, mm_dtype=mm_dtype)

    out_padded = pl.pallas_call(
        kernel,
        out_shape=jax.ShapeDtypeStruct((B, out_pad), x.dtype),
        grid_spec=pl.GridSpec(
            grid=(pl.cdiv(B, TB),),
            in_specs=[
                pl.BlockSpec((TB, d_pad), lambda i: (i, 0)),       # x tile (streamed)
                pl.BlockSpec((d_pad, d_pad), lambda i: (0, 0)),    # W1 (resident)
                pl.BlockSpec((1, d_pad), lambda i: (0, 0)),        # b1
                pl.BlockSpec((1, d_pad), lambda i: (0, 0)),        # gamma
                pl.BlockSpec((1, d_pad), lambda i: (0, 0)),        # beta
                pl.BlockSpec((d_pad, out_pad), lambda i: (0, 0)),  # W2 (padded cols)
                pl.BlockSpec((1, out_pad), lambda i: (0, 0)),      # b2
            ],
            out_specs=pl.BlockSpec((TB, out_pad), lambda i: (i, 0)),
        ),
        compiler_params=pltpu.CompilerParams(
            dimension_semantics=("parallel",),
            vmem_limit_bytes=vmem_limit,
        ),
    )(x, w1, b1_2d, gamma_2d, beta_2d, w2, b2_2d)

    return out_padded[:, :C]


def _reference(x, w1, b1, gamma, beta, w2, b2, eps=1e-5):
    """Pure-JAX reference (exact erf GELU, matching PyTorch nn.GELU() default)."""
    xf = x.astype(jnp.float32)
    h = jnp.dot(xf, w1.astype(jnp.float32),
                precision=jax.lax.Precision.HIGHEST) + b1.astype(jnp.float32)
    mean = jnp.mean(h, axis=-1, keepdims=True)
    var = jnp.mean((h - mean) ** 2, axis=-1, keepdims=True)
    hn = (h - mean) * jax.lax.rsqrt(var + eps)
    hn = hn * gamma.astype(jnp.float32) + beta.astype(jnp.float32)
    act = jax.nn.gelu(hn, approximate=False)
    out = jnp.dot(act, w2.astype(jnp.float32),
                  precision=jax.lax.Precision.HIGHEST) + b2.astype(jnp.float32)
    return out.astype(x.dtype)


if __name__ == "__main__":
    key = jax.random.PRNGKey(0)
    k1, k2, k3, k4, k5, k6, k7 = jax.random.split(key, 7)

    batch, feature_dim, num_rot = 8, 32, 4

    x = jax.random.normal(k1, (batch, feature_dim), dtype=jnp.float32)
    # Linear(feature_dim, feature_dim)
    w1 = jax.random.normal(k2, (feature_dim, feature_dim), dtype=jnp.float32) * 0.1
    b1 = jax.random.normal(k3, (feature_dim,), dtype=jnp.float32) * 0.1
    # LayerNorm(feature_dim)
    gamma = 1.0 + 0.05 * jax.random.normal(k4, (feature_dim,), dtype=jnp.float32)
    beta = 0.05 * jax.random.normal(k5, (feature_dim,), dtype=jnp.float32)
    # Linear(feature_dim, 4)
    w2 = jax.random.normal(k6, (feature_dim, num_rot), dtype=jnp.float32) * 0.1
    b2 = jax.random.normal(k7, (num_rot,), dtype=jnp.float32) * 0.1

    out = rotation_predictor_forward(x, w1, b1, gamma, beta, w2, b2)
    jax.block_until_ready(out)

    ref = _reference(x, w1, b1, gamma, beta, w2, b2)
    assert out.shape == (batch, num_rot), out.shape
    assert jnp.allclose(out, ref, rtol=5e-4, atol=5e-4), (out, ref)
    print("KERNEL_OK")
</pallas_src>

<mosaic_0001>
module attributes {stable_mosaic.version = 11 : i64} {
  func.func @_rotation_predictor_kernel(%arg0: i32, %arg1: memref<8x128xf32, #tpu.memory_space<vmem>>, %arg2: memref<128x128xf32, #tpu.memory_space<vmem>>, %arg3: memref<1x128xf32, #tpu.memory_space<vmem>>, %arg4: memref<1x128xf32, #tpu.memory_space<vmem>>, %arg5: memref<1x128xf32, #tpu.memory_space<vmem>>, %arg6: memref<128x128xf32, #tpu.memory_space<vmem>>, %arg7: memref<1x128xf32, #tpu.memory_space<vmem>>, %arg8: memref<8x128xf32, #tpu.memory_space<vmem>>) attributes {dimension_semantics = [#tpu.dimension_semantics<parallel>], iteration_bounds = array<i64: 1>, scalar_prefetch = 0 : i64, scratch_operands = 0 : i64, tpu.core_type = #tpu.core_type<tc>, window_params = [{transform_indices = @transform_0, window_bounds = array<i64: 8, 128>}, {pipeline_mode = #tpu.pipeline_mode<synchronous>, transform_indices = @transform_1, window_bounds = array<i64: 128, 128>}, {pipeline_mode = #tpu.pipeline_mode<synchronous>, transform_indices = @transform_2, window_bounds = array<i64: 1, 128>}, {pipeline_mode = #tpu.pipeline_mode<synchronous>, transform_indices = @transform_3, window_bounds = array<i64: 1, 128>}, {pipeline_mode = #tpu.pipeline_mode<synchronous>, transform_indices = @transform_4, window_bounds = array<i64: 1, 128>}, {pipeline_mode = #tpu.pipeline_mode<synchronous>, transform_indices = @transform_5, window_bounds = array<i64: 128, 128>}, {pipeline_mode = #tpu.pipeline_mode<synchronous>, transform_indices = @transform_6, window_bounds = array<i64: 1, 128>}, {transform_indices = @transform_7, window_bounds = array<i64: 8, 128>}]} {
    %c0 = arith.constant 0 : index
    %c0_0 = arith.constant 0 : index
    %0 = vector.load %arg1[%c0, %c0_0] : memref<8x128xf32, #tpu.memory_space<vmem>>, vector<8x128xf32>
    %c0_1 = arith.constant 0 : index
    %c0_2 = arith.constant 0 : index
    %1 = vector.load %arg2[%c0_1, %c0_2] : memref<128x128xf32, #tpu.memory_space<vmem>>, vector<128x128xf32>
    %cst = arith.constant dense<0.000000e+00> : vector<8x128xf32>
    %2 = tpu.matmul %0, %1, %cst {dimension_numbers = #tpu.dot_dimension_numbers<[1], [0], [0], [1], [0, 0, 1, 1], [], []>} : vector<8x128xf32>, vector<128x128xf32>, vector<8x128xf32> -> vector<8x128xf32>
    %c0_3 = arith.constant 0 : index
    %c0_4 = arith.constant 0 : index
    %3 = vector.load %arg3[%c0_3, %c0_4] : memref<1x128xf32, #tpu.memory_space<vmem>>, vector<1x128xf32>
    %4 = vector.broadcast %3 : vector<1x128xf32> to vector<8x128xf32>
    %5 = arith.addf %2, %4 : vector<8x128xf32>
    %cst_5 = arith.constant dense<0.000000e+00> : vector<8xf32>
    %6 = vector.multi_reduction <add>, %5, %cst_5 [1] : vector<8x128xf32> to vector<8xf32>
    %7 = vector.shape_cast %6 : vector<8xf32> to vector<8x1xf32>
    %8 = arith.mulf %5, %5 : vector<8x128xf32>
    %cst_6 = arith.constant dense<0.000000e+00> : vector<8xf32>
    %9 = vector.multi_reduction <add>, %8, %cst_6 [1] : vector<8x128xf32> to vector<8xf32>
    %10 = vector.shape_cast %9 : vector<8xf32> to vector<8x1xf32>
    %cst_7 = arith.constant 3.125000e-02 : f32
    %11 = vector.broadcast %cst_7 : f32 to vector<8x1xf32>
    %12 = arith.mulf %7, %11 : vector<8x1xf32>
    %cst_8 = arith.constant 3.125000e-02 : f32
    %13 = vector.broadcast %cst_8 : f32 to vector<8x1xf32>
    %14 = arith.mulf %10, %13 : vector<8x1xf32>
    %15 = arith.mulf %12, %12 : vector<8x1xf32>
    %16 = arith.subf %14, %15 : vector<8x1xf32>
    %17 = vector.broadcast %12 : vector<8x1xf32> to vector<8x128xf32>
    %18 = arith.subf %5, %17 : vector<8x128xf32>
    %cst_9 = arith.constant 9.99999974E-6 : f32
    %19 = vector.broadcast %cst_9 : f32 to vector<8x1xf32>
    %20 = arith.addf %16, %19 : vector<8x1xf32>
    %21 = math.rsqrt %20 : vector<8x1xf32>
    %22 = vector.broadcast %21 : vector<8x1xf32> to vector<8x128xf32>
    %23 = arith.mulf %18, %22 : vector<8x128xf32>
    %c0_10 = arith.constant 0 : index
    %c0_11 = arith.constant 0 : index
    %24 = vector.load %arg4[%c0_10, %c0_11] : memref<1x128xf32, #tpu.memory_space<vmem>>, vector<1x128xf32>
    %25 = vector.broadcast %24 : vector<1x128xf32> to vector<8x128xf32>
    %26 = arith.mulf %23, %25 : vector<8x128xf32>
    %c0_12 = arith.constant 0 : index
    %c0_13 = arith.constant 0 : index
    %27 = vector.load %arg5[%c0_12, %c0_13] : memref<1x128xf32, #tpu.memory_space<vmem>>, vector<1x128xf32>
    %28 = vector.broadcast %27 : vector<1x128xf32> to vector<8x128xf32>
    %29 = arith.addf %26, %28 : vector<8x128xf32>
    %cst_14 = arith.constant 5.000000e-01 : f32
    %30 = vector.broadcast %cst_14 : f32 to vector<8x128xf32>
    %31 = arith.mulf %30, %29 : vector<8x128xf32>
    %cst_15 = arith.constant 0.707106769 : f32
    %32 = vector.broadcast %cst_15 : f32 to vector<8x128xf32>
    %33 = arith.mulf %29, %32 : vector<8x128xf32>
    %34 = math.absf %33 : vector<8x128xf32>
    %cst_16 = arith.constant 0.327591091 : f32
    %35 = vector.broadcast %cst_16 : f32 to vector<8x128xf32>
    %36 = arith.mulf %35, %34 : vector<8x128xf32>
    %cst_17 = arith.constant 1.000000e+00 : f32
    %37 = vector.broadcast %cst_17 : f32 to vector<8x128xf32>
    %38 = arith.addf %37, %36 : vector<8x128xf32>
    %cst_18 = arith.constant 1.000000e+00 : f32
    %39 = vector.broadcast %cst_18 : f32 to vector<8x128xf32>
    %40 = arith.divf %39, %38 : vector<8x128xf32>
    %cst_19 = arith.constant 1.06140542 : f32
    %41 = vector.broadcast %cst_19 : f32 to vector<8x128xf32>
    %42 = arith.mulf %41, %40 : vector<8x128xf32>
    %cst_20 = arith.constant -1.45315206 : f32
    %43 = vector.broadcast %cst_20 : f32 to vector<8x128xf32>
    %44 = arith.addf %42, %43 : vector<8x128xf32>
    %45 = arith.mulf %44, %40 : vector<8x128xf32>
    %cst_21 = arith.constant 1.42141378 : f32
    %46 = vector.broadcast %cst_21 : f32 to vector<8x128xf32>
    %47 = arith.addf %45, %46 : vector<8x128xf32>
    %48 = arith.mulf %47, %40 : vector<8x128xf32>
    %cst_22 = arith.constant -0.284496725 : f32
    %49 = vector.broadcast %cst_22 : f32 to vector<8x128xf32>
    %50 = arith.addf %48, %49 : vector<8x128xf32>
    %51 = arith.mulf %50, %40 : vector<8x128xf32>
    %cst_23 = arith.constant 0.254829586 : f32
    %52 = vector.broadcast %cst_23 : f32 to vector<8x128xf32>
    %53 = arith.addf %51, %52 : vector<8x128xf32>
    %54 = arith.mulf %53, %40 : vector<8x128xf32>
    %55 = arith.mulf %34, %34 : vector<8x128xf32>
    %cst_24 = arith.constant 0.000000e+00 : f32
    %56 = vector.broadcast %cst_24 : f32 to vector<8x128xf32>
    %57 = arith.subf %56, %55 : vector<8x128xf32>
    %58 = math.exp %57 : vector<8x128xf32>
    %59 = arith.mulf %54, %58 : vector<8x128xf32>
    %cst_25 = arith.constant 1.000000e+00 : f32
    %60 = vector.broadcast %cst_25 : f32 to vector<8x128xf32>
    %61 = arith.subf %60, %59 : vector<8x128xf32>
    %cst_26 = arith.constant 0.000000e+00 : f32
    %62 = vector.broadcast %cst_26 : f32 to vector<8x128xf32>
    %63 = arith.cmpf olt, %33, %62 : vector<8x128xf32>
    %cst_27 = arith.constant 0.000000e+00 : f32
    %64 = vector.broadcast %cst_27 : f32 to vector<8x128xf32>
    %65 = arith.subf %64, %61 : vector<8x128xf32>
    %66 = arith.select %63, %65, %61 : vector<8x128xi1>, vector<8x128xf32>
    %cst_28 = arith.constant 1.000000e+00 : f32
    %67 = vector.broadcast %cst_28 : f32 to vector<8x128xf32>
    %68 = arith.addf %67, %66 : vector<8x128xf32>
    %69 = arith.mulf %31, %68 : vector<8x128xf32>
    %c0_29 = arith.constant 0 : index
    %c0_30 = arith.constant 0 : index
    %70 = vector.load %arg6[%c0_29, %c0_30] : memref<128x128xf32, #tpu.memory_space<vmem>>, vector<128x128xf32>
    %cst_31 = arith.constant dense<0.000000e+00> : vector<8x128xf32>
    %71 = tpu.matmul %69, %70, %cst_31 {dimension_numbers = #tpu.dot_dimension_numbers<[1], [0], [0], [1], [0, 0, 1, 1], [], []>} : vector<8x128xf32>, vector<128x128xf32>, vector<8x128xf32> -> vector<8x128xf32>
    %c0_32 = arith.constant 0 : index
    %c0_33 = arith.constant 0 : index
    %72 = vector.load %arg7[%c0_32, %c0_33] : memref<1x128xf32, #tpu.memory_space<vmem>>, vector<1x128xf32>
    %73 = vector.broadcast %72 : vector<1x128xf32> to vector<8x128xf32>
    %74 = arith.addf %71, %73 : vector<8x128xf32>
    %c0_34 = arith.constant 0 : index
    %c0_35 = arith.constant 0 : index
    %75 = vector.load %arg8[%c0_34, %c0_35] : memref<8x128xf32, #tpu.memory_space<vmem>>, vector<8x128xf32>
    tpu.vector_store %arg8[%c0_34, %c0_35], %74 {strides = array<i32>} : memref<8x128xf32, #tpu.memory_space<vmem>>, vector<8x128xf32>,
    return
  }
  func.func @transform_0(%arg0: i32) -> (i32, i32) {
    %c0_i32 = arith.constant 0 : i32
    %c0_i32_0 = arith.constant 0 : i32
    return %arg0, %c0_i32 : i32, i32
  }
  func.func @transform_1(%arg0: i32) -> (i32, i32) {
    %c0_i32 = arith.constant 0 : i32
    %c0_i32_0 = arith.constant 0 : i32
    %c0_i32_1 = arith.constant 0 : i32
    return %c0_i32, %c0_i32_0 : i32, i32
  }
  func.func @transform_2(%arg0: i32) -> (i32, i32) {
    %c0_i32 = arith.constant 0 : i32
    %c0_i32_0 = arith.constant 0 : i32
    %c0_i32_1 = arith.constant 0 : i32
    return %c0_i32, %c0_i32_0 : i32, i32
  }
  func.func @transform_3(%arg0: i32) -> (i32, i32) {
    %c0_i32 = arith.constant 0 : i32
    %c0_i32_0 = arith.constant 0 : i32
    %c0_i32_1 = arith.constant 0 : i32
    return %c0_i32, %c0_i32_0 : i32, i32
  }
  func.func @transform_4(%arg0: i32) -> (i32, i32) {
    %c0_i32 = arith.constant 0 : i32
    %c0_i32_0 = arith.constant 0 : i32
    %c0_i32_1 = arith.constant 0 : i32
    return %c0_i32, %c0_i32_0 : i32, i32
  }
  func.func @transform_5(%arg0: i32) -> (i32, i32) {
    %c0_i32 = arith.constant 0 : i32
    %c0_i32_0 = arith.constant 0 : i32
    %c0_i32_1 = arith.constant 0 : i32
    return %c0_i32, %c0_i32_0 : i32, i32
  }
  func.func @transform_6(%arg0: i32) -> (i32, i32) {
    %c0_i32 = arith.constant 0 : i32
    %c0_i32_0 = arith.constant 0 : i32
    %c0_i32_1 = arith.constant 0 : i32
    return %c0_i32, %c0_i32_0 : i32, i32
  }
  func.func @transform_7(%arg0: i32) -> (i32, i32) {
    %c0_i32 = arith.constant 0 : i32
    %c0_i32_0 = arith.constant 0 : i32
    return %arg0, %c0_i32 : i32, i32
  }
}

</mosaic_0001>

<llo_original>
// kernel: tpu_custom_call.1
$region0: #{tpu_custom_call.1}
  #allocation0 [shape = 'u32[]', space=smem, size = 0x4, offset = 0x4, fixed_abs, tag = 'smem constant byte address 0x4 - core index']
  #allocation1 [shape = 'u32[144,128]{1,0:T(1,128)}', space=vmem, size = 0x12000, scoped, tag = 'internal scratch']
  %s0 = inlined_call_operand.hbm [shape: f32[8,128], index: 0, kind: input, shape index: {}]
  %s1 = inlined_call_operand.hbm [shape: f32[128,128], index: 1, kind: input, shape index: {}]
  %s2 = inlined_call_operand.vmem [shape: f32[1,128], index: 2, kind: input, shape index: {}]
  %s3 = inlined_call_operand.vmem [shape: f32[1,128], index: 3, kind: input, shape index: {}]
  %s4 = inlined_call_operand.vmem [shape: f32[1,128], index: 4, kind: input, shape index: {}]
  %s5 = inlined_call_operand.hbm [shape: f32[128,128], index: 5, kind: input, shape index: {}]
  %s6 = inlined_call_operand.vmem [shape: f32[1,128], index: 6, kind: input, shape index: {}]
  %s7 = inlined_call_operand.hbm [shape: f32[8,128], index: 7, kind: output, shape index: {}]
  %s8 = sld [smem:[#allocation0]]
  $region50: #{tpu_custom_call.1} parent=0
    _
  %s10 = ssub.s32 1, %s8
  %s11 = scalar_select 0, %s10, %s8
  $region1: #{tpu_custom_call.1} parent=0
    #allocation2 [shape = 'u8[4096]{0}', space=vmem, size = 0x1000, scoped, tag = 'input window, operand 0, single buffered']
    #allocation3 [shape = 's32[1]{0}', space=sflag, size = 0x4, scoped, tag = 'scoped memory for tpu_custom_call.1']
    #allocation4 [shape = 's32[1]{0}', space=sflag, size = 0x4, scoped, tag = 'scoped memory for tpu_custom_call.1']
    #allocation5 [shape = 'u8[65536]{0}', space=vmem, size = 0x10000, scoped, tag = 'input window, operand 1, single buffered']
    #allocation6 [shape = 's32[1]{0}', space=sflag, size = 0x4, scoped, tag = 'scoped memory for tpu_custom_call.1']
    #allocation7 [shape = 'u8[65536]{0}', space=vmem, size = 0x10000, scoped, tag = 'input window, operand 5, single buffered']
    #allocation8 [shape = 'u8[4096]{0}', space=vmem, size = 0x1000, scoped, tag = 'output window, operand 0, single buffered']
    %12 = vsyncpa [#allocation3], 0
    %13 = vsyncpa [#allocation6], 0
    %14 = vsyncpa [#allocation4], 0
    // Predicated region
    $region2: #{tpu_custom_call.1} parent=1 // pred_check
      _
    $region3: #{tpu_custom_call.1} parent=1 // pred_check_branch
      %16 = sbr.rel (0) target = $region5
    $region4: #{tpu_custom_call.1} parent=1 // pred_region
      %s18 = ssub.s32 128, 128
      %19 = vsyncadd [#allocation3], %s18
      %s21 = sshll.u32 [#allocation2], 4
      %s22 = int_to_ptr.vmem [resolvable:$true] %s21
      %24 = dma.hbm_to_vmem [thread:$0]  %s0, 128, %s22, [#allocation3]
    $region5: #{tpu_custom_call.1} parent=1 // pred_fallthru
      _
    // Predicated region
    $region6: #{tpu_custom_call.1} parent=1 // pred_check
      _
    $region7: #{tpu_custom_call.1} parent=1 // pred_check_branch
      %26 = sbr.rel (0) target = $region9
    $region8: #{tpu_custom_call.1} parent=1 // pred_region
      %s28 = ssub.s32 2048, 2048
      %29 = vsyncadd [#allocation6], %s28
      %s30 = sshll.u32 [#allocation5], 4
      %s31 = int_to_ptr.vmem [resolvable:$true] %s30
      %36 = dma.hbm_to_vmem [thread:$0]  %s1, 2048, %s31, [#allocation6], 128, 128, 8
    $region9: #{tpu_custom_call.1} parent=1 // pred_fallthru
      _
    // Predicated region
    $region10: #{tpu_custom_call.1} parent=1 // pred_check
      _
    $region11: #{tpu_custom_call.1} parent=1 // pred_check_branch
      %38 = sbr.rel (0) target = $region13
    $region12: #{tpu_custom_call.1} parent=1 // pred_region
      _
    $region13: #{tpu_custom_call.1} parent=1 // pred_fallthru
      _
    // Predicated region
    $region14: #{tpu_custom_call.1} parent=1 // pred_check
      _
    $region15: #{tpu_custom_call.1} parent=1 // pred_check_branch
      %40 = sbr.rel (0) target = $region17
    $region16: #{tpu_custom_call.1} parent=1 // pred_region
      _
    $region17: #{tpu_custom_call.1} parent=1 // pred_fallthru
      _
    // Predicated region
    $region18: #{tpu_custom_call.1} parent=1 // pred_check
      _
    $region19: #{tpu_custom_call.1} parent=1 // pred_check_branch
      %42 = sbr.rel (0) target = $region21
    $region20: #{tpu_custom_call.1} parent=1 // pred_region
      _
    $region21: #{tpu_custom_call.1} parent=1 // pred_fallthru
      _
    // Predicated region
    $region22: #{tpu_custom_call.1} parent=1 // pred_check
      _
    $region23: #{tpu_custom_call.1} parent=1 // pred_check_branch
      %44 = sbr.rel (0) target = $region25
    $region24: #{tpu_custom_call.1} parent=1 // pred_region
      %s46 = ssub.s32 2048, 2048
      %47 = vsyncadd [#allocation6], %s46
      %s48 = sshll.u32 [#allocation7], 4
      %s49 = int_to_ptr.vmem [resolvable:$true] %s48
      %54 = dma.hbm_to_vmem [thread:$0]  %s5, 2048, %s49, [#allocation6], 128, 128, 8
    $region25: #{tpu_custom_call.1} parent=1 // pred_fallthru
      _
    // Predicated region
    $region26: #{tpu_custom_call.1} parent=1 // pred_check
      _
    $region27: #{tpu_custom_call.1} parent=1 // pred_check_branch
      %56 = sbr.rel (0) target = $region29
    $region28: #{tpu_custom_call.1} parent=1 // pred_region
      _
    $region29: #{tpu_custom_call.1} parent=1 // pred_fallthru
      _
    // Predicated region
    $region30: #{tpu_custom_call.1} parent=1 // pred_check
      _
    $region31: #{tpu_custom_call.1} parent=1 // pred_check_branch
      %58 = sbr.rel (0) target = $region33
    $region32: #{tpu_custom_call.1} parent=1 // pred_region
      %59 = dma.done [#allocation3], 128
    $region33: #{tpu_custom_call.1} parent=1 // pred_fallthru
      _
    // Predicated region
    $region34: #{tpu_custom_call.1} parent=1 // pred_check
      _
    $region35: #{tpu_custom_call.1} parent=1 // pred_check_branch
      %61 = sbr.rel (0) target = $region37
    $region36: #{tpu_custom_call.1} parent=1 // pred_region
      %62 = dma.done [#allocation6], 2048
    $region37: #{tpu_custom_call.1} parent=1 // pred_fallthru
      _
    // Predicated region
    $region38: #{tpu_custom_call.1} parent=1 // pred_check
      _
    $region39: #{tpu_custom_call.1} parent=1 // pred_check_branch
      %64 = sbr.rel (0) target = $region41
    $region40: #{tpu_custom_call.1} parent=1 // pred_region
      %65 = dma.done [#allocation6], 2048
    $region41: #{tpu_custom_call.1} parent=1 // pred_fallthru
      _
    %v66 = vld [vmem:[#allocation2] sm:$0xff]
    %v67 = vld [vmem:[#allocation5] sm:$0xff]
    %v68 = vld [vmem:[#allocation5 + $0x8] sm:$0xff]
    %v69 = vld [vmem:[#allocation5 + $0x10] sm:$0xff]
    %v70 = vld [vmem:[#allocation5 + $0x18] sm:$0xff]
    %v71 = vld [vmem:[#allocation5 + $0x20] sm:$0xff]
    %v72 = vld [vmem:[#allocation5 + $0x28] sm:$0xff]
    %v73 = vld [vmem:[#allocation5 + $0x30] sm:$0xff]
    %v74 = vld [vmem:[#allocation5 + $0x38] sm:$0xff]
    %v75 = vld [vmem:[#allocation5 + $0x40] sm:$0xff]
    %v76 = vld [vmem:[#allocation5 + $0x48] sm:$0xff]
    %v77 = vld [vmem:[#allocation5 + $0x50] sm:$0xff]
    %v78 = vld [vmem:[#allocation5 + $0x58] sm:$0xff]
    %v79 = vld [vmem:[#allocation5 + $0x60] sm:$0xff]
    %v80 = vld [vmem:[#allocation5 + $0x68] sm:$0xff]
    %v81 = vld [vmem:[#allocation5 + $0x70] sm:$0xff]
    %v82 = vld [vmem:[#allocation5 + $0x78] sm:$0xff]
    %v83 = vld [vmem:[%s2] sm:$0x1]
    %v85 = vlaneseq
    %v86 = vshrl.u32 %v85, 7
    %v87 = vsub.s32 0, %v86
    %v88 = vrot.slane %v83, %v87
    %90 = vmatprep.subr.mxu0 0.0
    %91 = vmatpush1.msra.mxu0 %v82
    %92 = vmatprep.subr.mxu0 0.0
    %93 = vmatpush1.msra.mxu0 %v81
    %94 = vmatprep.subr.mxu0 0.0
    %95 = vmatpush1.msra.mxu0 %v80
    %96 = vmatprep.subr.mxu0 0.0
    %97 = vmatpush1.msra.mxu0 %v79
    %98 = vmatprep.subr.mxu0 0.0
    %99 = vmatpush1.msra.mxu0 %v78
    %100 = vmatprep.subr.mxu0 0.0
    %101 = vmatpush1.msra.mxu0 %v77
    %102 = vmatprep.subr.mxu0 0.0
    %103 = vmatpush1.msra.mxu0 %v76
    %104 = vmatprep.subr.mxu0 0.0
    %105 = vmatpush1.msra.mxu0 %v75
    %106 = vmatprep.subr.mxu0 0.0
    %107 = vmatpush1.msra.mxu0 %v74
    %108 = vmatprep.subr.mxu0 0.0
    %109 = vmatpush1.msra.mxu0 %v73
    %110 = vmatprep.subr.mxu0 0.0
    %111 = vmatpush1.msra.mxu0 %v72
    %112 = vmatprep.subr.mxu0 0.0
    %113 = vmatpush1.msra.mxu0 %v71
    %114 = vmatprep.subr.mxu0 0.0
    %115 = vmatpush1.msra.mxu0 %v70
    %116 = vmatprep.subr.mxu0 0.0
    %117 = vmatpush1.msra.mxu0 %v69
    %118 = vmatprep.subr.mxu0 0.0
    %119 = vmatpush1.msra.mxu0 %v68
    %120 = vmatprep.subr.mxu0 0.0
    %121 = vmatpush1.msra.mxu0 %v67
    %122 = vmatprep.subr.mxu0 0.0
    %123 = vmatpush2.msra.mxu0 0.0
    %124 = vmatprep.subr.mxu0 0.0
    %125 = vmatpush2.msra.mxu0 0.0
    %126 = vmatprep.subr.mxu0 0.0
    %127 = vmatpush2.msra.mxu0 0.0
    %128 = vmatprep.subr.mxu0 0.0
    %129 = vmatpush2.msra.mxu0 0.0
    %130 = vmatprep.subr.mxu0 0.0
    %131 = vmatpush2.msra.mxu0 0.0
    %132 = vmatprep.subr.mxu0 0.0
    %133 = vmatpush2.msra.mxu0 0.0
    %134 = vmatprep.subr.mxu0 0.0
    %135 = vmatpush2.msra.mxu0 0.0
    %136 = vmatprep.subr.mxu0 0.0
    %137 = vmatpush2.msra.mxu0 0.0
    %138 = vmatprep.subr.mxu0 0.0
    %139 = vmatpush2.msra.mxu0 0.0
    %140 = vmatprep.subr.mxu0 0.0
    %141 = vmatpush2.msra.mxu0 0.0
    %142 = vmatprep.subr.mxu0 0.0
    %143 = vmatpush2.msra.mxu0 0.0
    %144 = vmatprep.subr.mxu0 0.0
    %145 = vmatpush2.msra.mxu0 0.0
    %146 = vmatprep.subr.mxu0 0.0
    %147 = vmatpush2.msra.mxu0 0.0
    %148 = vmatprep.subr.mxu0 0.0
    %149 = vmatpush2.msra.mxu0 0.0
    %150 = vmatprep.subr.mxu0 0.0
    %151 = vmatpush2.msra.mxu0 0.0
    %152 = vmatprep.subr.mxu0 0.0
    %153 = vmatpush2.msra.mxu0 0.0
    %154 = vmatprep.mubr.f32.mxu0 0.0
    %155 = vmatmul.mubr.f32.gmra.mxu0 %v66
    %v156 = vpop.f32.mrf.mxu0
    %v157 = vadd.f32 %v88, %v156
    %v158 = vpop.f32.mrf.mxu0
    %159 = vdwg.mxu0
    %160 = vadd.xlane.f32.xlu0 %v157
    %v161 = vpop.xlane.xlu0 %160
    %v162 = vmul.f32 %v157, %v157
    %163 = vadd.xlane.f32.xlu0 %v162
    %v164 = vpop.xlane.xlu0 %163
    %v165 = vmul.f32 %v161, 0.03125
    %v166 = vmul.f32 %v164, 0.03125
    %v167 = vmul.f32 %v165, %v165
    %v168 = vsub.f32 %v166, %v167
    %v169 = vsub.f32 %v157, %v165
    %v170 = vadd.f32 %v168, 1e-05
    %v171 = vrsqrt.pop %v170
    %v172 = vmul.f32 %v169, %v171
    %v173 = vld [vmem:[%s3] sm:$0x1]
    %v175 = vlaneseq
    %v176 = vshrl.u32 %v175, 7
    %v177 = vsub.s32 0, %v176
    %v178 = vrot.slane %v173, %v177
    %v180 = vmul.f32 %v172, %v178
    %v181 = vld [vmem:[%s4] sm:$0x1]
    %v183 = vlaneseq
    %v184 = vshrl.u32 %v183, 7
    %v185 = vsub.s32 0, %v184
    %v186 = vrot.slane %v181, %v185
    %v188 = vadd.f32 %v180, %v186
    %v189 = vmul.f32 %v188, 0.5
    %v190 = vmul.f32 %v188, 0.70710677
    %v191 = vand.u32 2147483647, %v190
    %v192 = vmul.f32 %v191, 0.3275911
    %v193 = vadd.f32 %v192, 1.0
    %v194 = vrcp.pop %v193
    %v195 = vmul.f32 1.0, %v194
    %v196 = vmul.f32 %v195, 1.0614054
    %v197 = vadd.f32 %v196, -1.4531521
    %v198 = vmul.f32 %v197, %v195
    %v199 = vadd.f32 %v198, 1.4214138
    %v200 = vmul.f32 %v199, %v195
    %v201 = vadd.f32 %v200, -0.28449672
    %v202 = vmul.f32 %v201, %v195
    %v203 = vadd.f32 %v202, 0.2548296
    %v204 = vmul.f32 %v203, %v195
    %v205 = vmul.f32 %v191, %v191
    %v206 = vsub.f32 0.0, %v205
    %v207 = vmul.f32 %v206, 1.442695
    %v208 = vpow.pop %v207
    %v209 = vmul.f32 %v204, %v208
    %v210 = vsub.f32 1.0, %v209
    %vm211 = vcmp.lt.f32.partialorder %v190, 0.0
    %v212 = vsub.f32 0.0, %v210
    %v213 = vsel %vm211, %v212, %v210
    %v214 = vadd.f32 %v213, 1.0
    %v215 = vmul.f32 %v189, %v214
    %v216 = vld [vmem:[#allocation7] sm:$0xff]
    %v217 = vld [vmem:[#allocation7 + $0x8] sm:$0xff]
    %v218 = vld [vmem:[#allocation7 + $0x10] sm:$0xff]
    %v219 = vld [vmem:[#allocation7 + $0x18] sm:$0xff]
    %v220 = vld [vmem:[#allocation7 + $0x20] sm:$0xff]
    %v221 = vld [vmem:[#allocation7 + $0x28] sm:$0xff]
    %v222 = vld [vmem:[#allocation7 + $0x30] sm:$0xff]
    %v223 = vld [vmem:[#allocation7 + $0x38] sm:$0xff]
    %v224 = vld [vmem:[#allocation7 + $0x40] sm:$0xff]
    %v225 = vld [vmem:[#allocation7 + $0x48] sm:$0xff]
    %v226 = vld [vmem:[#allocation7 + $0x50] sm:$0xff]
    %v227 = vld [vmem:[#allocation7 + $0x58] sm:$0xff]
    %v228 = vld [vmem:[#allocation7 + $0x60] sm:$0xff]
    %v229 = vld [vmem:[#allocation7 + $0x68] sm:$0xff]
    %v230 = vld [vmem:[#allocation7 + $0x70] sm:$0xff]
    %v231 = vld [vmem:[#allocation7 + $0x78] sm:$0xff]
    %v232 = vld [vmem:[%s6] sm:$0x1]
    %v234 = vlaneseq
    %v235 = vshrl.u32 %v234, 7
    %v236 = vsub.s32 0, %v235
    %v237 = vrot.slane %v232, %v236
    %239 = vmatprep.subr.mxu0 0.0
    %240 = vmatpush1.msra.mxu0 %v231
    %241 = vmatprep.subr.mxu0 0.0
    %242 = vmatpush1.msra.mxu0 %v230
    %243 = vmatprep.subr.mxu0 0.0
    %244 = vmatpush1.msra.mxu0 %v229
    %245 = vmatprep.subr.mxu0 0.0
    %246 = vmatpush1.msra.mxu0 %v228
    %247 = vmatprep.subr.mxu0 0.0
    %248 = vmatpush1.msra.mxu0 %v227
    %249 = vmatprep.subr.mxu0 0.0
    %250 = vmatpush1.msra.mxu0 %v226
    %251 = vmatprep.subr.mxu0 0.0
    %252 = vmatpush1.msra.mxu0 %v225
    %253 = vmatprep.subr.mxu0 0.0
    %254 = vmatpush1.msra.mxu0 %v224
    %255 = vmatprep.subr.mxu0 0.0
    %256 = vmatpush1.msra.mxu0 %v223
    %257 = vmatprep.subr.mxu0 0.0
    %258 = vmatpush1.msra.mxu0 %v222
    %259 = vmatprep.subr.mxu0 0.0
    %260 = vmatpush1.msra.mxu0 %v221
    %261 = vmatprep.subr.mxu0 0.0
    %262 = vmatpush1.msra.mxu0 %v220
    %263 = vmatprep.subr.mxu0 0.0
    %264 = vmatpush1.msra.mxu0 %v219
    %265 = vmatprep.subr.mxu0 0.0
    %266 = vmatpush1.msra.mxu0 %v218
    %267 = vmatprep.subr.mxu0 0.0
    %268 = vmatpush1.msra.mxu0 %v217
    %269 = vmatprep.subr.mxu0 0.0
    %270 = vmatpush1.msra.mxu0 %v216
    %271 = vmatprep.subr.mxu0 0.0
    %272 = vmatpush2.msra.mxu0 0.0
    %273 = vmatprep.subr.mxu0 0.0
    %274 = vmatpush2.msra.mxu0 0.0
    %275 = vmatprep.subr.mxu0 0.0
    %276 = vmatpush2.msra.mxu0 0.0
    %277 = vmatprep.subr.mxu0 0.0
    %278 = vmatpush2.msra.mxu0 0.0
    %279 = vmatprep.subr.mxu0 0.0
    %280 = vmatpush2.msra.mxu0 0.0
    %281 = vmatprep.subr.mxu0 0.0
    %282 = vmatpush2.msra.mxu0 0.0
    %283 = vmatprep.subr.mxu0 0.0
    %284 = vmatpush2.msra.mxu0 0.0
    %285 = vmatprep.subr.mxu0 0.0
    %286 = vmatpush2.msra.mxu0 0.0
    %287 = vmatprep.subr.mxu0 0.0
    %288 = vmatpush2.msra.mxu0 0.0
    %289 = vmatprep.subr.mxu0 0.0
    %290 = vmatpush2.msra.mxu0 0.0
    %291 = vmatprep.subr.mxu0 0.0
    %292 = vmatpush2.msra.mxu0 0.0
    %293 = vmatprep.subr.mxu0 0.0
    %294 = vmatpush2.msra.mxu0 0.0
    %295 = vmatprep.subr.mxu0 0.0
    %296 = vmatpush2.msra.mxu0 0.0
    %297 = vmatprep.subr.mxu0 0.0
    %298 = vmatpush2.msra.mxu0 0.0
    %299 = vmatprep.subr.mxu0 0.0
    %300 = vmatpush2.msra.mxu0 0.0
    %301 = vmatprep.subr.mxu0 0.0
    %302 = vmatpush2.msra.mxu0 0.0
    %303 = vmatprep.mubr.f32.mxu0 0.0
    %304 = vmatmul.mubr.f32.gmra.mxu0 %v215
    %v305 = vpop.f32.mrf.mxu0
    %v306 = vadd.f32 %v237, %v305
    %v307 = vpop.f32.mrf.mxu0
    %308 = vdwg.mxu0
    %309 = vst [vmem:[#allocation8] sm:$0xff] %v306
    // Predicated region
    $region42: #{tpu_custom_call.1} parent=1 // pred_check
      _
    $region43: #{tpu_custom_call.1} parent=1 // pred_check_branch
      %311 = sbr.rel (0) target = $region45
    $region44: #{tpu_custom_call.1} parent=1 // pred_region
      %s313 = ssub.s32 128, 128
      %314 = vsyncadd [#allocation4], %s313
      %s316 = sshll.u32 [#allocation8], 4
      %s317 = int_to_ptr.vmem [resolvable:$true] %s316
      %319 = dma.vmem_to_hbm [thread:$0]  %s317, 128, %s7, [#allocation4]
    $region45: #{tpu_custom_call.1} parent=1 // pred_fallthru
      _
    // Predicated region
    $region46: #{tpu_custom_call.1} parent=1 // pred_check
      _
    $region47: #{tpu_custom_call.1} parent=1 // pred_check_branch
      %321 = sbr.rel (0) target = $region49
    $region48: #{tpu_custom_call.1} parent=1 // pred_region
      %322 = dma.done [#allocation4], 128
    $region49: #{tpu_custom_call.1} parent=1 // pred_fallthru
      _
    %323 = vsyncpa [#allocation3], 1
    %324 = vsyncpa [#allocation6], 1
    %325 = vsyncpa [#allocation4], 1

</llo_original>
